<compile_context>
chip_gen: v7x
topology: tpu7x:2x2x1
jax: 0.10.0
libtpu: 0.0.40
codegen_flags: <defaults>
</compile_context>

<pallas_src>
import functools

import jax
import jax.numpy as jnp
from jax.experimental import pallas as pl
from jax.experimental.pallas import tpu as pltpu

_LANE = 128
_SUBLANE = 8


def tail_kernel(x_ref, w_ref, b_ref, o_ref, *, inv_hw):
    # x_ref: [TB, C, HW]  (NCHW, spatially flattened)
    # w_ref: [C, Npad] f32 (fc weight transposed, lane-padded)
    # b_ref: [1, Npad] f32
    # o_ref: [TB, Npad] f32
    #
    # Global average pool: reduce over the lane axis (HW) with f32
    # accumulation, without materialising an f32 copy of the whole tile.
    pooled = jnp.sum(x_ref[...], axis=-1, dtype=jnp.float32) * inv_hw   # [TB, C]
    # Fully connected layer on the MXU: pooled @ W^T + b.
    out = jnp.dot(pooled, w_ref[...], preferred_element_type=jnp.float32)
    o_ref[...] = (out + b_ref[...]).astype(o_ref.dtype)


def _vmem_capacity_bytes():
    """Physical VMEM per TensorCore; conservative fallback if the query fails."""
    try:
        info = pltpu.get_tpu_info()
        cap = getattr(info, "vmem_capacity_bytes", None)
        if cap:
            return int(cap)
    except Exception:
        pass
    return 64 << 20  # v7x per-TC VMEM — safe lower bound for all generations


def _pick_batch_tile(B, C, HW, itemsize, act_budget_bytes):
    """Batch tile: multiple of 8 (or == B), double-buffered activation within
    budget, and >=2 grid steps so v7x's two TensorCores both get work."""
    per_row = C * HW * itemsize
    tb = max(1, act_budget_bytes // (2 * per_row))   # 2x: double-buffered input
    tb = min(tb, B)
    if B <= _SUBLANE:
        return B                                      # single full-extent block
    tb = max(_SUBLANE, (tb // _SUBLANE) * _SUBLANE)   # sublane-aligned output tile
    if tb >= B:
        # Cap so the batch grid has at least 2 steps (megacore + pipeline overlap).
        tb = max(_SUBLANE, ((B // 2) // _SUBLANE) * _SUBLANE)
    return tb


def tail_model_forward(x_nchw, fc_weight, fc_bias, *, batch_tile=None):
    """x_nchw: [B, C, H, W]; fc_weight: [N, C]; fc_bias: [N] -> [B, N]."""
    B, C, H, W = x_nchw.shape
    N = fc_weight.shape[0]
    HW = H * W
    n_pad = pl.cdiv(N, _LANE) * _LANE

    # Free reshape only (no transpose, no extra HBM pass over the activation).
    x_r = x_nchw.reshape(B, C, HW)

    # fc weight/bias: pre-cast to f32 once, transpose, pad out to 128 lanes.
    w_t = jnp.zeros((C, n_pad), jnp.float32).at[:, :N].set(
        fc_weight.astype(jnp.float32).T)
    b_2d = jnp.zeros((1, n_pad), jnp.float32).at[:, :N].set(
        fc_bias.astype(jnp.float32)[None, :])

    vmem_cap = _vmem_capacity_bytes()
    act_budget = max(8 << 20, vmem_cap // 4)          # double-buffered activation
    vmem_limit = min(max(32 << 20, vmem_cap // 2), 64 << 20)

    if batch_tile is not None:
        tb = batch_tile
        assert tb == B or tb % _SUBLANE == 0, \
            "batch_tile must be a multiple of 8 or equal to the batch size"
    else:
        tb = _pick_batch_tile(B, C, HW, x_r.dtype.itemsize, act_budget)

    grid = (pl.cdiv(B, tb),)                          # remainder block is fine

    kernel = functools.partial(tail_kernel, inv_hw=1.0 / HW)

    out_padded = pl.pallas_call(
        kernel,
        out_shape=jax.ShapeDtypeStruct((B, n_pad), jnp.float32),
        grid=grid,
        in_specs=[
            pl.BlockSpec((tb, C, HW), lambda b: (b, 0, 0)),   # NCHW activation tile
            pl.BlockSpec((C, n_pad), lambda b: (0, 0)),       # VMEM-resident W^T (f32)
            pl.BlockSpec((1, n_pad), lambda b: (0, 0)),       # VMEM-resident bias (f32)
        ],
        out_specs=pl.BlockSpec((tb, n_pad), lambda b: (b, 0)),
        compiler_params=pltpu.CompilerParams(
            dimension_semantics=("parallel",),                # megacore on v7x
            vmem_limit_bytes=vmem_limit,
        ),
        cost_estimate=pl.CostEstimate(
            flops=2 * B * C * n_pad + B * C * HW,
            transcendentals=0,
            bytes_accessed=(x_r.size * x_r.dtype.itemsize
                            + w_t.size * 4
                            + b_2d.size * 4
                            + B * n_pad * 4),
        ),
    )(x_r, w_t, b_2d)

    return out_padded[:, :N]


def tail_model_reference(x_nchw, fc_weight, fc_bias):
    pooled = jnp.mean(x_nchw.astype(jnp.float32), axis=(2, 3))  # avgpool + flatten
    return pooled @ fc_weight.astype(jnp.float32).T + fc_bias.astype(jnp.float32)


if __name__ == "__main__":
    # Small deterministic shapes; the auto tile picker produces a 2-step batch
    # grid here (tb=8 over B=16), exercising the double-buffered pipeline.
    B, C, H, W, N = 16, 32, 8, 8, 10
    key = jax.random.PRNGKey(0)
    kx, kw, kb = jax.random.split(key, 3)

    x = jax.random.normal(kx, (B, C, H, W), dtype=jnp.float32)
    fc_weight = jax.random.normal(kw, (N, C), dtype=jnp.float32) * 0.05
    fc_bias = jax.random.normal(kb, (N,), dtype=jnp.float32) * 0.05

    ref = tail_model_reference(x, fc_weight, fc_bias)

    # Auto-picked tile (multi-step grid).
    out = jax.block_until_ready(tail_model_forward(x, fc_weight, fc_bias))
    assert out.shape == (B, N)
    assert jnp.allclose(out, ref, atol=1e-4, rtol=1e-4), "mismatch vs reference"

    # Explicit tile with a remainder block (B=16, tb=8 divides; also try B' not
    # divisible by the tile to exercise the cdiv remainder path).
    out2 = jax.block_until_ready(
        tail_model_forward(x[:12], fc_weight, fc_bias, batch_tile=8))
    ref2 = tail_model_reference(x[:12], fc_weight, fc_bias)
    assert jnp.allclose(out2, ref2, atol=1e-4, rtol=1e-4), "mismatch (remainder)"

    # bf16 activations (f32 accumulation happens inside the kernel).
    out3 = jax.block_until_ready(
        tail_model_forward(x.astype(jnp.bfloat16), fc_weight, fc_bias))
    assert jnp.allclose(out3, ref, atol=2e-2, rtol=2e-2), "mismatch (bf16)"

    print("KERNEL_OK")
</pallas_src>

<mosaic_0001>
module attributes {stable_mosaic.version = 11 : i64} {
  func.func @tail_kernel(%arg0: i32, %arg1: memref<8x32x64xf32, #tpu.memory_space<vmem>>, %arg2: memref<32x128xf32, #tpu.memory_space<vmem>>, %arg3: memref<1x128xf32, #tpu.memory_space<vmem>>, %arg4: memref<8x128xf32, #tpu.memory_space<vmem>>) attributes {dimension_semantics = [#tpu.dimension_semantics<parallel>], iteration_bounds = array<i64: 2>, scalar_prefetch = 0 : i64, scratch_operands = 0 : i64, tpu.core_type = #tpu.core_type<tc>, window_params = [{transform_indices = @transform_0, window_bounds = array<i64: 8, 32, 64>}, {pipeline_mode = #tpu.pipeline_mode<synchronous>, transform_indices = @transform_1, window_bounds = array<i64: 32, 128>}, {pipeline_mode = #tpu.pipeline_mode<synchronous>, transform_indices = @transform_2, window_bounds = array<i64: 1, 128>}, {transform_indices = @transform_3, window_bounds = array<i64: 8, 128>}]} {
    %c0 = arith.constant 0 : index
    %c0_0 = arith.constant 0 : index
    %c0_1 = arith.constant 0 : index
    %0 = vector.load %arg1[%c0, %c0_0, %c0_1] : memref<8x32x64xf32, #tpu.memory_space<vmem>>, vector<8x32x64xf32>
    %cst = arith.constant dense<0.000000e+00> : vector<8x32xf32>
    %1 = vector.multi_reduction <add>, %0, %cst [2] : vector<8x32x64xf32> to vector<8x32xf32>
    %cst_2 = arith.constant 1.562500e-02 : f32
    %2 = vector.broadcast %cst_2 : f32 to vector<8x32xf32>
    %3 = arith.mulf %1, %2 : vector<8x32xf32>
    %c0_3 = arith.constant 0 : index
    %c0_4 = arith.constant 0 : index
    %4 = vector.load %arg2[%c0_3, %c0_4] : memref<32x128xf32, #tpu.memory_space<vmem>>, vector<32x128xf32>
    %cst_5 = arith.constant dense<0.000000e+00> : vector<8x128xf32>
    %5 = tpu.matmul %3, %4, %cst_5 {dimension_numbers = #tpu.dot_dimension_numbers<[1], [0], [0], [1], [0, 0, 1, 1], [], []>} : vector<8x32xf32>, vector<32x128xf32>, vector<8x128xf32> -> vector<8x128xf32>
    %c0_6 = arith.constant 0 : index
    %c0_7 = arith.constant 0 : index
    %6 = vector.load %arg3[%c0_6, %c0_7] : memref<1x128xf32, #tpu.memory_space<vmem>>, vector<1x128xf32>
    %7 = vector.broadcast %6 : vector<1x128xf32> to vector<8x128xf32>
    %8 = arith.addf %5, %7 : vector<8x128xf32>
    %c0_8 = arith.constant 0 : index
    %c0_9 = arith.constant 0 : index
    %9 = vector.load %arg4[%c0_8, %c0_9] : memref<8x128xf32, #tpu.memory_space<vmem>>, vector<8x128xf32>
    tpu.vector_store %arg4[%c0_8, %c0_9], %8 {strides = array<i32>} : memref<8x128xf32, #tpu.memory_space<vmem>>, vector<8x128xf32>,
    return
  }
  func.func @transform_0(%arg0: i32) -> (i32, i32, i32) {
    %c0_i32 = arith.constant 0 : i32
    %c0_i32_0 = arith.constant 0 : i32
    %c0_i32_1 = arith.constant 0 : i32
    return %arg0, %c0_i32, %c0_i32_0 : i32, i32, i32
  }
  func.func @transform_1(%arg0: i32) -> (i32, i32) {
    %c0_i32 = arith.constant 0 : i32
    %c0_i32_0 = arith.constant 0 : i32
    %c0_i32_1 = arith.constant 0 : i32
    return %c0_i32, %c0_i32_0 : i32, i32
  }
  func.func @transform_2(%arg0: i32) -> (i32, i32) {
    %c0_i32 = arith.constant 0 : i32
    %c0_i32_0 = arith.constant 0 : i32
    %c0_i32_1 = arith.constant 0 : i32
    return %c0_i32, %c0_i32_0 : i32, i32
  }
  func.func @transform_3(%arg0: i32) -> (i32, i32) {
    %c0_i32 = arith.constant 0 : i32
    %c0_i32_0 = arith.constant 0 : i32
    return %arg0, %c0_i32 : i32, i32
  }
}

</mosaic_0001>

<llo_original>
// kernel: tpu_custom_call.1
$region0: #{tpu_custom_call.1}
  #allocation0 [shape = 'u32[]', space=smem, size = 0x4, offset = 0x4, fixed_abs, tag = 'smem constant byte address 0x4 - core index']
  #allocation1 [shape = 'u32[144,128]{1,0:T(1,128)}', space=vmem, size = 0x12000, scoped, tag = 'internal scratch']
  %s0 = inlined_call_operand.hbm [shape: f32[16,32,64], index: 0, kind: input, shape index: {}]
  %s1 = inlined_call_operand.hbm [shape: f32[32,128], index: 1, kind: input, shape index: {}]
  %s2 = inlined_call_operand.vmem [shape: f32[1,128], index: 2, kind: input, shape index: {}]
  %s3 = inlined_call_operand.hbm [shape: f32[16,128], index: 3, kind: output, shape index: {}]
  %s4 = sld [smem:[#allocation0]]
  $region53: #{tpu_custom_call.1} parent=0
    _
  %s6 = ssub.s32 1, %s4
  %s7 = scalar_select 0, %s6, %s4
  $region1: #{tpu_custom_call.1} parent=0
    #allocation2 [shape = 'u8[262144]{0}', space=vmem, size = 0x40000, scoped, tag = 'input window, operand 0']
    #allocation3 [shape = 's32[2]{0}', space=sflag, size = 0x8, scoped, tag = 'scoped memory for tpu_custom_call.1']
    #allocation4 [shape = 's32[2]{0}', space=sflag, size = 0x8, scoped, tag = 'scoped memory for tpu_custom_call.1']
    #allocation5 [shape = 'u8[16384]{0}', space=vmem, size = 0x4000, scoped, tag = 'input window, operand 1, single buffered']
    #allocation6 [shape = 's32[1]{0}', space=sflag, size = 0x4, scoped, tag = 'scoped memory for tpu_custom_call.1']
    #allocation7 [shape = 'u8[8192]{0}', space=vmem, size = 0x2000, scoped, tag = 'output window, operand 0']
    %8 = vsyncpa [#allocation3], 0
    %s9 = scalar_lea.sflag [#allocation3], 1
    %10 = vsyncpa %s9, 0
    %11 = vsyncpa [#allocation6], 0
    %12 = vsyncpa [#allocation4], 0
    %s13 = scalar_lea.sflag [#allocation4], 1
    %14 = vsyncpa %s13, 0
    loop: start=0, step=1, limit=4
    $region2: #{tpu_custom_call.1} parent=1 // loop_pre_header
      _
    $region3: #{tpu_custom_call.1} parent=1 // loop_header
      %s16 = sphi 0, %s20
      %p17 = scmp.ge.s32.totalorder %s16, 4
      %s26 = sphi 0, %s28
      %s29 = sphi 0, %s26
      %s30 = sphi 0, %s29
      %s46 = sphi 0, %s30
      %s50 = sphi 0, %s50
      %s52 = sphi 0, %s50
      %s53 = sphi 0, %s52
      %s67 = sphi 0, %s53
      %s71 = sphi 0, %s71
      %s73 = sphi 0, %s71
      %s74 = sphi 0, %s73
      %s88 = sphi 0, %s74
      %s94 = sphi 0, %s96
      %s97 = sphi 0, %s94
      %s98 = sphi 0, %s97
      %s114 = sphi 0, %s98
    $region4: #{tpu_custom_call.1} parent=1 // loop_header_branch
      %19 = sbr.rel (%p17) target = $region8
    $region5: #{tpu_custom_call.1} parent=1 // loop_body
      %s21 = ssub.s32 %s16, 1
      %s22 = ssub.s32 %s16, 2
      %s23 = sadd.s32 %s16, 1
      %s24 = ssub.s32 %s16, %s23
      %p25 = scmp.eq.s32.totalorder %s24, 0
      %s27 = sadd.s32 %s26, 1
      %s28 = scalar_select %p25, %s26, %s27
      %p31 = pneg %p25
      %p32 = scmp.eq.s32.totalorder %s16, 1
      %p33 = por %p31, %p32
      %p34 = scmp.ne.s32.totalorder %s26, %s29
      %p35 = scmp.eq.s32.totalorder %s16, 0
      %p36 = por %p34, %p35
      %p37 = scmp.ne.s32.totalorder %s26, %s29
      %p38 = scmp.eq.s32.totalorder %s21, 1
      %p39 = por %p37, %p38
      %p40 = scmp.ne.s32.totalorder %s29, %s30
      %p41 = scmp.eq.s32.totalorder %s21, 0
      %p42 = por %p40, %p41
      %p43 = scmp.ne.s32.totalorder %s29, %s30
      %p44 = scmp.eq.s32.totalorder %s22, 1
      %p45 = por %p43, %p44
      %p47 = scmp.ne.s32.totalorder %s30, %s46
      %p48 = scmp.eq.s32.totalorder %s22, 0
      %p49 = por %p47, %p48
      %s51 = sadd.s32 %s50, 1
      %p54 = scmp.eq.s32.totalorder %s16, 1
      %p55 = scmp.ne.s32.totalorder %s50, %s52
      %p56 = scmp.eq.s32.totalorder %s16, 0
      %p57 = por %p55, %p56
      %p58 = scmp.ne.s32.totalorder %s50, %s52
      %p59 = scmp.eq.s32.totalorder %s21, 1
      %p60 = por %p58, %p59
      %p61 = scmp.ne.s32.totalorder %s52, %s53
      %p62 = scmp.eq.s32.totalorder %s21, 0
      %p63 = por %p61, %p62
      %p64 = scmp.ne.s32.totalorder %s52, %s53
      %p65 = scmp.eq.s32.totalorder %s22, 1
      %p66 = por %p64, %p65
      %p68 = scmp.ne.s32.totalorder %s53, %s67
      %p69 = scmp.eq.s32.totalorder %s22, 0
      %p70 = por %p68, %p69
      %s72 = sadd.s32 %s71, 1
      %p75 = scmp.eq.s32.totalorder %s16, 1
      %p76 = scmp.ne.s32.totalorder %s71, %s73
      %p77 = scmp.eq.s32.totalorder %s16, 0
      %p78 = por %p76, %p77
      %p79 = scmp.ne.s32.totalorder %s71, %s73
      %p80 = scmp.eq.s32.totalorder %s21, 1
      %p81 = por %p79, %p80
      %p82 = scmp.ne.s32.totalorder %s73, %s74
      %p83 = scmp.eq.s32.totalorder %s21, 0
      %p84 = por %p82, %p83
      %p85 = scmp.ne.s32.totalorder %s73, %s74
      %p86 = scmp.eq.s32.totalorder %s22, 1
      %p87 = por %p85, %p86
      %p89 = scmp.ne.s32.totalorder %s74, %s88
      %p90 = scmp.eq.s32.totalorder %s22, 0
      %p91 = por %p89, %p90
      %s92 = ssub.s32 %s16, %s23
      %p93 = scmp.eq.s32.totalorder %s92, 0
      %s95 = sadd.s32 %s94, 1
      %s96 = scalar_select %p93, %s94, %s95
      %p99 = pneg %p93
      %p100 = scmp.eq.s32.totalorder %s16, 1
      %p101 = por %p99, %p100
      %p102 = scmp.ne.s32.totalorder %s94, %s97
      %p103 = scmp.eq.s32.totalorder %s16, 0
      %p104 = por %p102, %p103
      %p105 = scmp.ne.s32.totalorder %s94, %s97
      %p106 = scmp.eq.s32.totalorder %s21, 1
      %p107 = por %p105, %p106
      %p108 = scmp.ne.s32.totalorder %s97, %s98
      %p109 = scmp.eq.s32.totalorder %s21, 0
      %p110 = por %p108, %p109
      %p111 = scmp.ne.s32.totalorder %s97, %s98
      %p112 = scmp.eq.s32.totalorder %s22, 1
      %p113 = por %p111, %p112
      %p115 = scmp.ne.s32.totalorder %s98, %s114
      %p116 = scmp.eq.s32.totalorder %s22, 0
      %p117 = por %p115, %p116
      %p118 = scmp.le.s32.totalorder 1, %s16
      %p119 = scmp.lt.s32.totalorder %s16, 3
      %p120 = pnand %p118, %p119
      %p121 = pneg %p120
      // Predicated region
      $region9: #{tpu_custom_call.1} parent=5 // pred_check
        _
      $region10: #{tpu_custom_call.1} parent=5 // pred_check_branch
        %123 = sbr.rel (%p120) target = $region12
      $region11: #{tpu_custom_call.1} parent=5 // pred_region
        %s124 = ssub.s32 %s16, 1
        // Predicated region
        $region13: #{tpu_custom_call.1} parent=11 // pred_check
          %p125 = pneg %p63
        $region14: #{tpu_custom_call.1} parent=11 // pred_check_branch
          %127 = sbr.rel (%p125) target = $region16
        $region15: #{tpu_custom_call.1} parent=11 // pred_region
          %s129 = ssub.s32 512, 512
          %130 = vsyncadd [#allocation6], %s129
          %s131 = sshll.u32 [#allocation5], 4
          %s132 = int_to_ptr.vmem [resolvable:$true] %s131
          %137 = dma.hbm_to_vmem [thread:$0]  %s1, 512, %s132, [#allocation6], 128, 128, 8
        $region16: #{tpu_custom_call.1} parent=11 // pred_fallthru
          _
        // Predicated region
        $region17: #{tpu_custom_call.1} parent=11 // pred_check
          %p138 = pneg %p84
        $region18: #{tpu_custom_call.1} parent=11 // pred_check_branch
          %140 = sbr.rel (%p138) target = $region20
        $region19: #{tpu_custom_call.1} parent=11 // pred_region
          _
        $region20: #{tpu_custom_call.1} parent=11 // pred_fallthru
          _
      $region12: #{tpu_custom_call.1} parent=5 // pred_fallthru
        _
      %p141 = scmp.lt.s32.totalorder %s16, 2
      // Predicated region
      $region21: #{tpu_custom_call.1} parent=5 // pred_check
        %p142 = pneg %p141
      $region22: #{tpu_custom_call.1} parent=5 // pred_check_branch
        %144 = sbr.rel (%p142) target = $region24
      $region23: #{tpu_custom_call.1} parent=5 // pred_region
        // Predicated region
        $region25: #{tpu_custom_call.1} parent=23 // pred_check
          %p145 = pneg %p36
        $region26: #{tpu_custom_call.1} parent=23 // pred_check_branch
          %147 = sbr.rel (%p145) target = $region28
        $region27: #{tpu_custom_call.1} parent=23 // pred_region
          %s148 = sand.u32 %s26, 1
          %s149 = scalar_lea.sflag [#allocation3], %s148
          %s150 = sand.u32 %s26, 1
          %s151 = smul.addr %s150, 256
          %s152 = scalar_lea.vmem [#allocation2], %s151
          %s153 = smul.u32 8, %s16
          %s155 = ssub.s32 4096, 4096
          %156 = vsyncadd %s149, %s155
          %s157 = smul.addr %s153, 4
          %s158 = smul.addr %s157, 128
          %s159 = scalar_lea.hbm %s0, %s158
          %s160 = sshll.u32 %s152, 4
          %s161 = int_to_ptr.vmem [resolvable:$true] %s160
          %166 = dma.hbm_to_vmem [thread:$0]  %s159, 4096, %s161, %s149, 128, 128, 8
        $region28: #{tpu_custom_call.1} parent=23 // pred_fallthru
          _
      $region24: #{tpu_custom_call.1} parent=5 // pred_fallthru
        _
      %p167 = scmp.le.s32.totalorder 1, %s16
      %p168 = scmp.lt.s32.totalorder %s16, 3
      %p169 = pnand %p167, %p168
      %p170 = pneg %p169
      // Predicated region
      $region29: #{tpu_custom_call.1} parent=5 // pred_check
        _
      $region30: #{tpu_custom_call.1} parent=5 // pred_check_branch
        %172 = sbr.rel (%p169) target = $region32
      $region31: #{tpu_custom_call.1} parent=5 // pred_region
        %s173 = ssub.s32 %s16, 1
        %s174 = sand.u32 %s29, 1
        %s175 = scalar_lea.sflag [#allocation3], %s174
        %s176 = sand.u32 %s29, 1
        %s177 = smul.addr %s176, 256
        %s178 = scalar_lea.vmem [#allocation2], %s177
        // Predicated region
        $region33: #{tpu_custom_call.1} parent=31 // pred_check
          %p179 = pneg %p42
        $region34: #{tpu_custom_call.1} parent=31 // pred_check_branch
          %181 = sbr.rel (%p179) target = $region36
        $region35: #{tpu_custom_call.1} parent=31 // pred_region
          %182 = dma.done %s175, 4096
        $region36: #{tpu_custom_call.1} parent=31 // pred_fallthru
          _
        // Predicated region
        $region37: #{tpu_custom_call.1} parent=31 // pred_check
          %p183 = pneg %p63
        $region38: #{tpu_custom_call.1} parent=31 // pred_check_branch
          %185 = sbr.rel (%p183) target = $region40
        $region39: #{tpu_custom_call.1} parent=31 // pred_region
          %186 = dma.done [#allocation6], 512
        $region40: #{tpu_custom_call.1} parent=31 // pred_fallthru
          _
        %s187 = sand.u32 %s29, 1
        %s188 = scalar_lea.sflag [#allocation3], %s187
        %s189 = sand.u32 %s29, 1
        %s190 = smul.addr %s189, 256
        %s191 = scalar_lea.vmem [#allocation2], %s190
        %p192 = pneg %p42
        %p193 = pneg %p39
        %p194 = pneg %p63
        %p195 = pneg %p60
        %p196 = pneg %p84
        %p197 = pneg %p81
        %p198 = pneg %p110
        %p199 = pneg %p107
        %s200 = sand.u32 %s97, 1
        %s201 = scalar_lea.sflag [#allocation4], %s200
        %s202 = sand.u32 %s97, 1
        %s203 = smul.addr %s202, 8
        %s204 = scalar_lea.vmem [#allocation7], %s203
        %s205 = smul.u32 8, %s21
        %v206 = vld [vmem:[%s178] sm:$0xff]
        %v207 = vld [vmem:[%s178 + $0x8] sm:$0xff]
        %v208 = vld [vmem:[%s178 + $0x10] sm:$0xff]
        %v209 = vld [vmem:[%s178 + $0x18] sm:$0xff]
        %v210 = vld [vmem:[%s178 + $0x20] sm:$0xff]
        %v211 = vld [vmem:[%s178 + $0x28] sm:$0xff]
        %v212 = vld [vmem:[%s178 + $0x30] sm:$0xff]
        %v213 = vld [vmem:[%s178 + $0x38] sm:$0xff]
        %v214 = vld [vmem:[%s178 + $0x40] sm:$0xff]
        %v215 = vld [vmem:[%s178 + $0x48] sm:$0xff]
        %v216 = vld [vmem:[%s178 + $0x50] sm:$0xff]
        %v217 = vld [vmem:[%s178 + $0x58] sm:$0xff]
        %v218 = vld [vmem:[%s178 + $0x60] sm:$0xff]
        %v219 = vld [vmem:[%s178 + $0x68] sm:$0xff]
        %v220 = vld [vmem:[%s178 + $0x70] sm:$0xff]
        %v221 = vld [vmem:[%s178 + $0x78] sm:$0xff]
        %v222 = vld [vmem:[%s178 + $0x80] sm:$0xff]
        %v223 = vld [vmem:[%s178 + $0x88] sm:$0xff]
        %v224 = vld [vmem:[%s178 + $0x90] sm:$0xff]
        %v225 = vld [vmem:[%s178 + $0x98] sm:$0xff]
        %v226 = vld [vmem:[%s178 + $0xa0] sm:$0xff]
        %v227 = vld [vmem:[%s178 + $0xa8] sm:$0xff]
        %v228 = vld [vmem:[%s178 + $0xb0] sm:$0xff]
        %v229 = vld [vmem:[%s178 + $0xb8] sm:$0xff]
        %v230 = vld [vmem:[%s178 + $0xc0] sm:$0xff]
        %v231 = vld [vmem:[%s178 + $0xc8] sm:$0xff]
        %v232 = vld [vmem:[%s178 + $0xd0] sm:$0xff]
        %v233 = vld [vmem:[%s178 + $0xd8] sm:$0xff]
        %v234 = vld [vmem:[%s178 + $0xe0] sm:$0xff]
        %v235 = vld [vmem:[%s178 + $0xe8] sm:$0xff]
        %v236 = vld [vmem:[%s178 + $0xf0] sm:$0xff]
        %v237 = vld [vmem:[%s178 + $0xf8] sm:$0xff]
        %vm238 = vcmask 523264
        %v239 = vsel %vm238, %v206, 0.0
        %240 = vadd.xlane.f32.xlu0 %v239
        %v241 = vpop.xlane.xlu0 %240
        %v242 = vsel %vm238, %v207, 0.0
        %243 = vadd.xlane.f32.xlu0 %v242
        %v244 = vpop.xlane.xlu0 %243
        %v245 = vsel %vm238, %v208, 0.0
        %246 = vadd.xlane.f32.xlu0 %v245
        %v247 = vpop.xlane.xlu0 %246
        %v248 = vsel %vm238, %v209, 0.0
        %249 = vadd.xlane.f32.xlu0 %v248
        %v250 = vpop.xlane.xlu0 %249
        %v251 = vsel %vm238, %v210, 0.0
        %252 = vadd.xlane.f32.xlu0 %v251
        %v253 = vpop.xlane.xlu0 %252
        %v254 = vsel %vm238, %v211, 0.0
        %255 = vadd.xlane.f32.xlu0 %v254
        %v256 = vpop.xlane.xlu0 %255
        %v257 = vsel %vm238, %v212, 0.0
        %258 = vadd.xlane.f32.xlu0 %v257
        %v259 = vpop.xlane.xlu0 %258
        %v260 = vsel %vm238, %v213, 0.0
        %261 = vadd.xlane.f32.xlu0 %v260
        %v262 = vpop.xlane.xlu0 %261
        %v263 = vsel %vm238, %v214, 0.0
        %264 = vadd.xlane.f32.xlu0 %v263
        %v265 = vpop.xlane.xlu0 %264
        %v266 = vsel %vm238, %v215, 0.0
        %267 = vadd.xlane.f32.xlu0 %v266
        %v268 = vpop.xlane.xlu0 %267
        %v269 = vsel %vm238, %v216, 0.0
        %270 = vadd.xlane.f32.xlu0 %v269
        %v271 = vpop.xlane.xlu0 %270
        %v272 = vsel %vm238, %v217, 0.0
        %273 = vadd.xlane.f32.xlu0 %v272
        %v274 = vpop.xlane.xlu0 %273
        %v275 = vsel %vm238, %v218, 0.0
        %276 = vadd.xlane.f32.xlu0 %v275
        %v277 = vpop.xlane.xlu0 %276
        %v278 = vsel %vm238, %v219, 0.0
        %279 = vadd.xlane.f32.xlu0 %v278
        %v280 = vpop.xlane.xlu0 %279
        %v281 = vsel %vm238, %v220, 0.0
        %282 = vadd.xlane.f32.xlu0 %v281
        %v283 = vpop.xlane.xlu0 %282
        %v284 = vsel %vm238, %v221, 0.0
        %285 = vadd.xlane.f32.xlu0 %v284
        %v286 = vpop.xlane.xlu0 %285
        %v287 = vsel %vm238, %v222, 0.0
        %288 = vadd.xlane.f32.xlu0 %v287
        %v289 = vpop.xlane.xlu0 %288
        %v290 = vsel %vm238, %v223, 0.0
        %291 = vadd.xlane.f32.xlu0 %v290
        %v292 = vpop.xlane.xlu0 %291
        %v293 = vsel %vm238, %v224, 0.0
        %294 = vadd.xlane.f32.xlu0 %v293
        %v295 = vpop.xlane.xlu0 %294
        %v296 = vsel %vm238, %v225, 0.0
        %297 = vadd.xlane.f32.xlu0 %v296
        %v298 = vpop.xlane.xlu0 %297
        %v299 = vsel %vm238, %v226, 0.0
        %300 = vadd.xlane.f32.xlu0 %v299
        %v301 = vpop.xlane.xlu0 %300
        %v302 = vsel %vm238, %v227, 0.0
        %303 = vadd.xlane.f32.xlu0 %v302
        %v304 = vpop.xlane.xlu0 %303
        %v305 = vsel %vm238, %v228, 0.0
        %306 = vadd.xlane.f32.xlu0 %v305
        %v307 = vpop.xlane.xlu0 %306
        %v308 = vsel %vm238, %v229, 0.0
        %309 = vadd.xlane.f32.xlu0 %v308
        %v310 = vpop.xlane.xlu0 %309
        %v311 = vsel %vm238, %v230, 0.0
        %312 = vadd.xlane.f32.xlu0 %v311
        %v313 = vpop.xlane.xlu0 %312
        %v314 = vsel %vm238, %v231, 0.0
        %315 = vadd.xlane.f32.xlu0 %v314
        %v316 = vpop.xlane.xlu0 %315
        %v317 = vsel %vm238, %v232, 0.0
        %318 = vadd.xlane.f32.xlu0 %v317
        %v319 = vpop.xlane.xlu0 %318
        %v320 = vsel %vm238, %v233, 0.0
        %321 = vadd.xlane.f32.xlu0 %v320
        %v322 = vpop.xlane.xlu0 %321
        %v323 = vsel %vm238, %v234, 0.0
        %324 = vadd.xlane.f32.xlu0 %v323
        %v325 = vpop.xlane.xlu0 %324
        %v326 = vsel %vm238, %v235, 0.0
        %327 = vadd.xlane.f32.xlu0 %v326
        %v328 = vpop.xlane.xlu0 %327
        %v329 = vsel %vm238, %v236, 0.0
        %330 = vadd.xlane.f32.xlu0 %v329
        %v331 = vpop.xlane.xlu0 %330
        %v332 = vsel %vm238, %v237, 0.0
        %333 = vadd.xlane.f32.xlu0 %v332
        %v334 = vpop.xlane.xlu0 %333
        %v335 = vmul.f32 %v241, 0.015625
        %v336 = vmul.f32 %v244, 0.015625
        %v337 = vmul.f32 %v247, 0.015625
        %v338 = vmul.f32 %v250, 0.015625
        %v339 = vmul.f32 %v253, 0.015625
        %v340 = vmul.f32 %v256, 0.015625
        %v341 = vmul.f32 %v259, 0.015625
        %v342 = vmul.f32 %v262, 0.015625
        %v343 = vmul.f32 %v265, 0.015625
        %v344 = vmul.f32 %v268, 0.015625
        %v345 = vmul.f32 %v271, 0.015625
        %v346 = vmul.f32 %v274, 0.015625
        %v347 = vmul.f32 %v277, 0.015625
        %v348 = vmul.f32 %v280, 0.015625
        %v349 = vmul.f32 %v283, 0.015625
        %v350 = vmul.f32 %v286, 0.015625
        %v351 = vmul.f32 %v289, 0.015625
        %v352 = vmul.f32 %v292, 0.015625
        %v353 = vmul.f32 %v295, 0.015625
        %v354 = vmul.f32 %v298, 0.015625
        %v355 = vmul.f32 %v301, 0.015625
        %v356 = vmul.f32 %v304, 0.015625
        %v357 = vmul.f32 %v307, 0.015625
        %v358 = vmul.f32 %v310, 0.015625
        %v359 = vmul.f32 %v313, 0.015625
        %v360 = vmul.f32 %v316, 0.015625
        %v361 = vmul.f32 %v319, 0.015625
        %v362 = vmul.f32 %v322, 0.015625
        %v363 = vmul.f32 %v325, 0.015625
        %v364 = vmul.f32 %v328, 0.015625
        %v365 = vmul.f32 %v331, 0.015625
        %v366 = vmul.f32 %v334, 0.015625
        %v367 = vld [vmem:[#allocation5] sm:$0xff]
        %v368 = vld [vmem:[#allocation5 + $0x8] sm:$0xff]
        %v369 = vld [vmem:[#allocation5 + $0x10] sm:$0xff]
        %v370 = vld [vmem:[#allocation5 + $0x18] sm:$0xff]
        %v371 = vld [vmem:[%s2] sm:$0x1]
        %v373 = vlaneseq
        %v374 = vshrl.u32 %v373, 7
        %v375 = vsub.s32 0, %v374
        %v376 = vrot.slane %v371, %v375
        %v410 = vlaneseq
        %v411 = vand.u32 %v410, 127
        %v412 = vlaneseq
        %v413 = vshrl.u32 %v412, 7
        %v414 = vsub.s32 %v411, %v413
        %v415 = vrot.slane %v335, %v414
        %v416 = vadd.s32 %v411, 4294967288
        %v417 = vlaneseq
        %v418 = vshrl.u32 %v417, 7
        %v419 = vsub.s32 %v416, %v418
        %v420 = vrot.slane %v336, %v419
        %vm421 = vcmask 130112
        %v422 = vsel %vm421, %v420, %v415
        %v423 = vadd.s32 %v411, 4294967280
        %v424 = vlaneseq
        %v425 = vshrl.u32 %v424, 7
        %v426 = vsub.s32 %v423, %v425
        %v427 = vrot.slane %v337, %v426
        %vm428 = vcmask 195712
        %v429 = vsel %vm428, %v427, %v422
        %v430 = vadd.s32 %v411, 4294967272
        %v431 = vlaneseq
        %v432 = vshrl.u32 %v431, 7
        %v433 = vsub.s32 %v430, %v432
        %v434 = vrot.slane %v338, %v433
        %vm435 = vcmask 261312
        %v436 = vsel %vm435, %v434, %v429
        %v437 = vlaneseq
        %v438 = vshrl.u32 %v437, 7
        %v439 = vsub.s32 %v411, %v438
        %v440 = vrot.slane %v339, %v439
        %v441 = vlaneseq
        %v442 = vshrl.u32 %v441, 7
        %v443 = vsub.s32 %v416, %v442
        %v444 = vrot.slane %v340, %v443
        %v445 = vsel %vm421, %v444, %v440
        %v446 = vlaneseq
        %v447 = vshrl.u32 %v446, 7
        %v448 = vsub.s32 %v423, %v447
        %v449 = vrot.slane %v341, %v448
        %v450 = vsel %vm428, %v449, %v445
        %v451 = vlaneseq
        %v452 = vshrl.u32 %v451, 7
        %v453 = vsub.s32 %v430, %v452
        %v454 = vrot.slane %v342, %v453
        %v455 = vsel %vm435, %v454, %v450
        %v456 = vlaneseq
        %v457 = vshrl.u32 %v456, 7
        %v458 = vsub.s32 %v411, %v457
        %v459 = vrot.slane %v343, %v458
        %v460 = vlaneseq
        %v461 = vshrl.u32 %v460, 7
        %v462 = vsub.s32 %v416, %v461
        %v463 = vrot.slane %v344, %v462
        %v464 = vsel %vm421, %v463, %v459
        %v465 = vlaneseq
        %v466 = vshrl.u32 %v465, 7
        %v467 = vsub.s32 %v423, %v466
        %v468 = vrot.slane %v345, %v467
        %v469 = vsel %vm428, %v468, %v464
        %v470 = vlaneseq
        %v471 = vshrl.u32 %v470, 7
        %v472 = vsub.s32 %v430, %v471
        %v473 = vrot.slane %v346, %v472
        %v474 = vsel %vm435, %v473, %v469
        %v475 = vlaneseq
        %v476 = vshrl.u32 %v475, 7
        %v477 = vsub.s32 %v411, %v476
        %v478 = vrot.slane %v347, %v477
        %v479 = vlaneseq
        %v480 = vshrl.u32 %v479, 7
        %v481 = vsub.s32 %v416, %v480
        %v482 = vrot.slane %v348, %v481
        %v483 = vsel %vm421, %v482, %v478
        %v484 = vlaneseq
        %v485 = vshrl.u32 %v484, 7
        %v486 = vsub.s32 %v423, %v485
        %v487 = vrot.slane %v349, %v486
        %v488 = vsel %vm428, %v487, %v483
        %v489 = vlaneseq
        %v490 = vshrl.u32 %v489, 7
        %v491 = vsub.s32 %v430, %v490
        %v492 = vrot.slane %v350, %v491
        %v493 = vsel %vm435, %v492, %v488
        %v494 = vlaneseq
        %v495 = vshrl.u32 %v494, 7
        %v496 = vsub.s32 %v411, %v495
        %v497 = vrot.slane %v351, %v496
        %v498 = vlaneseq
        %v499 = vshrl.u32 %v498, 7
        %v500 = vsub.s32 %v416, %v499
        %v501 = vrot.slane %v352, %v500
        %v502 = vsel %vm421, %v501, %v497
        %v503 = vlaneseq
        %v504 = vshrl.u32 %v503, 7
        %v505 = vsub.s32 %v423, %v504
        %v506 = vrot.slane %v353, %v505
        %v507 = vsel %vm428, %v506, %v502
        %v508 = vlaneseq
        %v509 = vshrl.u32 %v508, 7
        %v510 = vsub.s32 %v430, %v509
        %v511 = vrot.slane %v354, %v510
        %v512 = vsel %vm435, %v511, %v507
        %v513 = vlaneseq
        %v514 = vshrl.u32 %v513, 7
        %v515 = vsub.s32 %v411, %v514
        %v516 = vrot.slane %v355, %v515
        %v517 = vlaneseq
        %v518 = vshrl.u32 %v517, 7
        %v519 = vsub.s32 %v416, %v518
        %v520 = vrot.slane %v356, %v519
        %v521 = vsel %vm421, %v520, %v516
        %v522 = vlaneseq
        %v523 = vshrl.u32 %v522, 7
        %v524 = vsub.s32 %v423, %v523
        %v525 = vrot.slane %v357, %v524
        %v526 = vsel %vm428, %v525, %v521
        %v527 = vlaneseq
        %v528 = vshrl.u32 %v527, 7
        %v529 = vsub.s32 %v430, %v528
        %v530 = vrot.slane %v358, %v529
        %v531 = vsel %vm435, %v530, %v526
        %v532 = vlaneseq
        %v533 = vshrl.u32 %v532, 7
        %v534 = vsub.s32 %v411, %v533
        %v535 = vrot.slane %v359, %v534
        %v536 = vlaneseq
        %v537 = vshrl.u32 %v536, 7
        %v538 = vsub.s32 %v416, %v537
        %v539 = vrot.slane %v360, %v538
        %v540 = vsel %vm421, %v539, %v535
        %v541 = vlaneseq
        %v542 = vshrl.u32 %v541, 7
        %v543 = vsub.s32 %v423, %v542
        %v544 = vrot.slane %v361, %v543
        %v545 = vsel %vm428, %v544, %v540
        %v546 = vlaneseq
        %v547 = vshrl.u32 %v546, 7
        %v548 = vsub.s32 %v430, %v547
        %v549 = vrot.slane %v362, %v548
        %v550 = vsel %vm435, %v549, %v545
        %v551 = vlaneseq
        %v552 = vshrl.u32 %v551, 7
        %v553 = vsub.s32 %v411, %v552
        %v554 = vrot.slane %v363, %v553
        %v555 = vlaneseq
        %v556 = vshrl.u32 %v555, 7
        %v557 = vsub.s32 %v416, %v556
        %v558 = vrot.slane %v364, %v557
        %v559 = vsel %vm421, %v558, %v554
        %v560 = vlaneseq
        %v561 = vshrl.u32 %v560, 7
        %v562 = vsub.s32 %v423, %v561
        %v563 = vrot.slane %v365, %v562
        %v564 = vsel %vm428, %v563, %v559
        %v565 = vlaneseq
        %v566 = vshrl.u32 %v565, 7
        %v567 = vsub.s32 %v430, %v566
        %v568 = vrot.slane %v366, %v567
        %v569 = vsel %vm435, %v568, %v564
        %vm570 = vcmask 1041409
        %v571 = vsel %vm570, %v455, %v436
        %vm572 = vcmask 1042434
        %v573 = vsel %vm572, %v474, %v571
        %vm574 = vcmask 1043459
        %v575 = vsel %vm574, %v493, %v573
        %vm576 = vcmask 1044484
        %v577 = vsel %vm576, %v512, %v575
        %vm578 = vcmask 1045509
        %v579 = vsel %vm578, %v531, %v577
        %vm580 = vcmask 1046534
        %v581 = vsel %vm580, %v550, %v579
        %vm582 = vcmask 1047559
        %v583 = vsel %vm582, %v569, %v581
        %vm584 = vcmask 261120
        %v585 = vsel %vm584, %v583, 0
        %587 = vmatprep.subr.mxu0 0.0
        %588 = vmatpush1.msra.mxu0 %v367
        %589 = vmatprep.subr.mxu0 0.0
        %590 = vmatpush1.msra.mxu0 %v368
        %591 = vmatprep.subr.mxu0 0.0
        %592 = vmatpush1.msra.mxu0 %v369
        %593 = vmatprep.subr.mxu0 0.0
        %594 = vmatpush1.msra.mxu0 %v370
        %595 = vmatprep.subr.mxu0 0.0
        %596 = vmatpush1.msra.mxu0 0.0
        %597 = vmatprep.subr.mxu0 0.0
        %598 = vmatpush1.msra.mxu0 0.0
        %599 = vmatprep.subr.mxu0 0.0
        %600 = vmatpush1.msra.mxu0 0.0
        %601 = vmatprep.subr.mxu0 0.0
        %602 = vmatpush1.msra.mxu0 0.0
        %603 = vmatprep.subr.mxu0 0.0
        %604 = vmatpush1.msra.mxu0 0.0
        %605 = vmatprep.subr.mxu0 0.0
        %606 = vmatpush1.msra.mxu0 0.0
        %607 = vmatprep.subr.mxu0 0.0
        %608 = vmatpush1.msra.mxu0 0.0
        %609 = vmatprep.subr.mxu0 0.0
        %610 = vmatpush1.msra.mxu0 0.0
        %611 = vmatprep.subr.mxu0 0.0
        %612 = vmatpush1.msra.mxu0 0.0
        %613 = vmatprep.subr.mxu0 0.0
        %614 = vmatpush1.msra.mxu0 0.0
        %615 = vmatprep.subr.mxu0 0.0
        %616 = vmatpush1.msra.mxu0 0.0
        %617 = vmatprep.subr.mxu0 0.0
        %618 = vmatpush1.msra.mxu0 0.0
        %619 = vmatprep.subr.mxu0 0.0
        %620 = vmatpush1.msra.mxu0 0.0
        %621 = vmatprep.subr.mxu0 0.0
        %622 = vmatpush1.msra.mxu0 0.0
        %623 = vmatprep.subr.mxu0 0.0
        %624 = vmatpush1.msra.mxu0 0.0
        %625 = vmatprep.subr.mxu0 0.0
        %626 = vmatpush1.msra.mxu0 0.0
        %627 = vmatprep.subr.mxu0 0.0
        %628 = vmatpush1.msra.mxu0 0.0
        %629 = vmatprep.subr.mxu0 0.0
        %630 = vmatpush1.msra.mxu0 0.0
        %631 = vmatprep.subr.mxu0 0.0
        %632 = vmatpush1.msra.mxu0 0.0
        %633 = vmatprep.subr.mxu0 0.0
        %634 = vmatpush1.msra.mxu0 0.0
        %635 = vmatprep.subr.mxu0 0.0
        %636 = vmatpush1.msra.mxu0 0.0
        %637 = vmatprep.subr.mxu0 0.0
        %638 = vmatpush1.msra.mxu0 0.0
        %639 = vmatprep.subr.mxu0 0.0
        %640 = vmatpush1.msra.mxu0 0.0
        %641 = vmatprep.subr.mxu0 0.0
        %642 = vmatpush1.msra.mxu0 0.0
        %643 = vmatprep.subr.mxu0 0.0
        %644 = vmatpush1.msra.mxu0 0.0
        %645 = vmatprep.subr.mxu0 0.0
        %646 = vmatpush1.msra.mxu0 0.0
        %647 = vmatprep.subr.mxu0 0.0
        %648 = vmatpush1.msra.mxu0 0.0
        %649 = vmatprep.subr.mxu0 0.0
        %650 = vmatpush1.msra.mxu0 0.0
        %651 = vmatprep.mubr.f32.mxu0 0.0
        %652 = vmatmul.mubr.f32.gmra.mrb[0].mxu0 %v585
        %v653 = vpop.f32.mrb[0].mxu0
        %v654 = vadd.f32 %v376, %v653
        %v655 = vpop.f32.mrb[0].mxu0
        %656 = vdwg.mxu0
        %657 = vst [vmem:[%s204] sm:$0xff] %v654
        %s658 = sand.u32 %s97, 1
        %s659 = scalar_lea.sflag [#allocation4], %s658
        %s660 = sand.u32 %s97, 1
        %s661 = smul.addr %s660, 8
        %s662 = scalar_lea.vmem [#allocation7], %s661
        // Predicated region
        $region41: #{tpu_custom_call.1} parent=31 // pred_check
          %p663 = pneg %p107
        $region42: #{tpu_custom_call.1} parent=31 // pred_check_branch
          %665 = sbr.rel (%p663) target = $region44
        $region43: #{tpu_custom_call.1} parent=31 // pred_region
          %s667 = ssub.s32 128, 128
          %668 = vsyncadd %s659, %s667
          %s669 = smul.addr %s21, 128
          %s670 = scalar_lea.hbm %s3, %s669
          %s672 = sshll.u32 %s662, 4
          %s673 = int_to_ptr.vmem [resolvable:$true] %s672
          %675 = dma.vmem_to_hbm [thread:$0]  %s673, 128, %s670, %s659
        $region44: #{tpu_custom_call.1} parent=31 // pred_fallthru
          _
      $region32: #{tpu_custom_call.1} parent=5 // pred_fallthru
        _
      %p676 = scmp.le.s32.totalorder 2, %s16
      // Predicated region
      $region45: #{tpu_custom_call.1} parent=5 // pred_check
        %p677 = pneg %p676
      $region46: #{tpu_custom_call.1} parent=5 // pred_check_branch
        %679 = sbr.rel (%p677) target = $region48
      $region47: #{tpu_custom_call.1} parent=5 // pred_region
        %s680 = ssub.s32 %s16, 2
        // Predicated region
        $region49: #{tpu_custom_call.1} parent=47 // pred_check
          %p681 = pneg %p113
        $region50: #{tpu_custom_call.1} parent=47 // pred_check_branch
          %683 = sbr.rel (%p681) target = $region52
        $region51: #{tpu_custom_call.1} parent=47 // pred_region
          %s684 = sand.u32 %s98, 1
          %s685 = scalar_lea.sflag [#allocation4], %s684
          %s686 = sand.u32 %s98, 1
          %s687 = smul.addr %s686, 8
          %s688 = scalar_lea.vmem [#allocation7], %s687
          %689 = dma.done %s685, 128
        $region52: #{tpu_custom_call.1} parent=47 // pred_fallthru
          _
      $region48: #{tpu_custom_call.1} parent=5 // pred_fallthru
        _
    $region6: #{tpu_custom_call.1} parent=1 // loop_footer
      %s20 = sadd.s32 1, %s16
    $region7: #{tpu_custom_call.1} parent=1 // loop_footer_branch
      %15 = sbr.rel target = $region3
    $region8: #{tpu_custom_call.1} parent=1 // loop_exit
      _
    %690 = vsyncpa [#allocation3], 1
    %s691 = scalar_lea.sflag [#allocation3], 1
    %692 = vsyncpa %s691, 1
    %693 = vsyncpa [#allocation6], 1
    %694 = vsyncpa [#allocation4], 1
    %s695 = scalar_lea.sflag [#allocation4], 1
    %696 = vsyncpa %s695, 1

</llo_original>
